<compile_context>
chip_gen: v5e
topology: v5e:2x2
jax: 0.10.0
libtpu: 0.0.40
codegen_flags: <defaults>
</compile_context>

<pallas_src>
import math
from functools import partial

import jax
import jax.numpy as jnp
from jax.experimental import pallas as pl
from jax.experimental.pallas import tpu as pltpu


def _device_kind() -> str:
    try:
        return jax.devices()[0].device_kind.lower()
    except Exception:
        return ""


def _choose_b_tile(B, V, kind):
    """Pick a lane-dense batch tile (multiple of 128, up to 1024 lanes)."""
    lane_blocks = pl.cdiv(B, 128)
    if lane_blocks <= 1:
        return 128
    # v7x has 2 TensorCores: keep >= 2 grid steps so the "parallel" batch axis
    # can be sharded across both cores. Single-core chips just maximize the tile.
    min_tiles = 2 if ("v7" in kind or "7x" in kind) else 1
    max_blocks = 8  # 1024 lanes: tile sweeps plateau near the HBM roofline here
    # Keep the in-kernel (V, b_tile) counts working set bounded (~4 MiB f32).
    max_blocks = max(1, min(max_blocks, (4 * 1024 * 1024) // max(V * 4 * 128, 1)))
    blocks = max(1, min(max_blocks, -(-lane_blocks // min_tiles)))
    return 128 * blocks


def _logreg_kernel(pad_idx, counts_dtype, ids_ref, w_ref, bias_ref, out_ref, ids32_ref):
    S, Bt = ids32_ref.shape          # sequence x lane-dense batch tile
    V = w_ref.shape[1]

    # Widen the (possibly int16/int8) ids tile into an int32 VMEM scratch once;
    # the per-row dynamic sublane loads below then use the 32-bit layout.
    ids32_ref[...] = ids_ref[...].astype(jnp.int32)

    # Fold bias + pad masking into the weight row: w'[v] = w[v]+bias, w'[pad]=0.
    bias = bias_ref[0]                                                   # SMEM scalar
    lane_v = jax.lax.broadcasted_iota(jnp.int32, (1, V), 1)              # (1, V)
    w_prime = jnp.where(lane_v == pad_idx, 0.0, w_ref[...] + bias)       # (1, V) f32

    # counts[v, b] = #{s : ids[s, b] == v}; vocab on sublanes, batch on lanes.
    v_iota = jax.lax.broadcasted_iota(jnp.int32, (V, Bt), 0)             # (V, Bt)

    def body(s, counts):
        row = ids32_ref[pl.ds(s, 1), :]                                  # (1, Bt) int32
        return counts + (row == v_iota).astype(counts_dtype)            # sublane bcast

    counts = jax.lax.fori_loop(
        0, S, body, jnp.zeros((V, Bt), counts_dtype), unroll=min(8, S))  # bounded unroll

    # scores(1, Bt) = w'(1, V) @ counts(V, Bt): fuses the sequence sum, keeps the
    # MXU output lane-dense. w' stays f32 for exactness; counts widen on the way in.
    scores = jnp.dot(w_prime, counts.astype(jnp.float32),
                     preferred_element_type=jnp.float32)                 # (1, Bt)

    prob_neg = jax.nn.sigmoid(scores)
    out_ref[0:1, :] = prob_neg
    out_ref[1:2, :] = 1.0 - prob_neg


def logistic_regression_forward(sentences, weights, bias, pad_idx, *, b_tile=None):
    """sentences: (S, B) int{8,16,32}; weights: (V, 1) f32; bias: (1,) f32 -> (2, B) f32."""
    S, B = sentences.shape
    V = weights.shape[0]

    kind = _device_kind()
    if b_tile is None:
        b_tile = _choose_b_tile(B, V, kind)

    # bf16 count accumulation is exact for S <= 256 and only pays off on chips
    # with bf16 VALU/MXU (v6e, v7x); keep f32 on v5e and for long sequences.
    use_bf16_counts = (S <= 256) and ("v6" in kind or "v7" in kind or "7x" in kind)
    counts_dtype = jnp.bfloat16 if use_bf16_counts else jnp.float32

    n_tiles = pl.cdiv(B, b_tile)
    b_pad = n_tiles * b_tile

    ids = sentences
    if not jnp.issubdtype(ids.dtype, jnp.integer):
        ids = ids.astype(jnp.int32)
    if b_pad != B:
        # Extra batch columns are <pad> tokens: they score 0 and are sliced off.
        ids = jnp.pad(ids, ((0, 0), (0, b_pad - B)), constant_values=pad_idx)

    w_row = weights.reshape(1, V).astype(jnp.float32)   # lane-dense weight row (VMEM)
    bias_smem = bias.reshape(1).astype(jnp.float32)     # scalar -> SMEM

    # Explicit per-step VMEM budget (double-buffered ids/out + scratch + counts).
    ids_bytes = jnp.dtype(ids.dtype).itemsize
    est_vmem = (2 * S * b_tile * ids_bytes              # double-buffered ids tile
                + S * b_tile * 4                        # int32 ids scratch
                + 2 * 2 * b_tile * 4                    # double-buffered output tile
                + V * b_tile * jnp.dtype(counts_dtype).itemsize   # counts live set
                + 2 * (V * 4 + 512))                    # resident weight row + slack
    vmem_limit = None
    if est_vmem > 12 * 1024 * 1024:                     # headroom under 16 MiB (v5e default)
        vmem_limit = int(min(2 * est_vmem, 60 * 1024 * 1024))   # stay under v7x physical

    out = pl.pallas_call(
        partial(_logreg_kernel, pad_idx, counts_dtype),
        out_shape=jax.ShapeDtypeStruct((2, b_pad), jnp.float32),
        grid=(n_tiles,),
        in_specs=[
            pl.BlockSpec((S, b_tile), lambda b: (0, b)),          # ids tile (pipelined)
            pl.BlockSpec((1, V), lambda b: (0, 0)),               # weight row, resident
            pl.BlockSpec(memory_space=pltpu.MemorySpace.SMEM),    # bias scalar in SMEM
        ],
        out_specs=pl.BlockSpec((2, b_tile), lambda b: (0, b)),
        scratch_shapes=[pltpu.VMEM((S, b_tile), jnp.int32)],      # widened ids tile
        compiler_params=pltpu.CompilerParams(
            dimension_semantics=("parallel",),
            vmem_limit_bytes=vmem_limit),
    )(ids, w_row, bias_smem)

    return out[:, :B]


def _reference_forward(sentences, weights, bias, pad_idx):
    """Pure-JAX mirror of the PyTorch forward for a correctness check."""
    S, B = sentences.shape
    flat = sentences.reshape(-1)
    selected = weights[flat]                                  # (N, 1)
    padding = (flat == pad_idx).astype(jnp.float32)[:, None]
    all_scores = ((selected + bias) * (1.0 - padding)).reshape(S, B)
    example_scores = jnp.sum(all_scores, axis=0, keepdims=True)
    prob_neg = jax.nn.sigmoid(example_scores)
    return jnp.concatenate([prob_neg, 1.0 - prob_neg], axis=0)


if __name__ == "__main__":
    # Synthetic "vocabulary": 32 tokens, torchtext-style <pad> at index 1.
    VOCAB_SIZE = 32
    PAD_IDX = 1
    SENT_LENGTH = 8
    BATCH_SIZE = 386     # not a lane multiple: exercises batch padding + fat-tile / multi-tile grid

    key = jax.random.PRNGKey(0)
    k_w, k_ids = jax.random.split(key)

    # nn.init.xavier_normal_ on a (V, 1) parameter: std = sqrt(2 / (fan_in + fan_out)).
    xavier_std = math.sqrt(2.0 / (VOCAB_SIZE + 1))
    weights = xavier_std * jax.random.normal(k_w, (VOCAB_SIZE, 1), dtype=jnp.float32)
    bias = jnp.array([0.25], dtype=jnp.float32)   # nonzero so the bias fold is actually tested

    sentences = jax.random.randint(
        k_ids, (SENT_LENGTH, BATCH_SIZE), 0, VOCAB_SIZE, dtype=jnp.int32
    )
    # Narrow token-id dtype: the ids DMA is ~all of the kernel's HBM traffic;
    # int16 halves it (V = 32 easily fits).
    sentences_i16 = sentences.astype(jnp.int16)

    out = jax.block_until_ready(
        logistic_regression_forward(sentences_i16, weights, bias, PAD_IDX))

    ref = _reference_forward(sentences, weights, bias, PAD_IDX)
    assert out.shape == (2, BATCH_SIZE), out.shape
    assert jnp.allclose(out, ref, atol=1e-5, rtol=1e-5), (out, ref)

    print("KERNEL_OK")
</pallas_src>

<mosaic_0001>
module attributes {stable_mosaic.version = 11 : i64} {
  func.func @_logreg_kernel(%arg0: i32, %arg1: memref<8x512xi16, #tpu.memory_space<vmem>>, %arg2: memref<1x32xf32, #tpu.memory_space<vmem>>, %arg3: memref<1xf32, #tpu.memory_space<smem>>, %arg4: memref<2x512xf32, #tpu.memory_space<vmem>>, %arg5: memref<8x512xi32, #tpu.memory_space<vmem>>) attributes {dimension_semantics = [#tpu.dimension_semantics<parallel>], iteration_bounds = array<i64: 1>, scalar_prefetch = 0 : i64, scratch_operands = 1 : i64, tpu.core_type = #tpu.core_type<tc>, window_params = [{transform_indices = @transform_0, window_bounds = array<i64: 8, 512>}, {pipeline_mode = #tpu.pipeline_mode<synchronous>, transform_indices = @transform_1, window_bounds = array<i64: 1, 32>}, {transform_indices = @transform_2, window_bounds = array<i64: 1>}, {transform_indices = @transform_3, window_bounds = array<i64: 2, 512>}]} {
    %c0 = arith.constant 0 : index
    %c0_0 = arith.constant 0 : index
    %0 = vector.load %arg1[%c0, %c0_0] : memref<8x512xi16, #tpu.memory_space<vmem>>, vector<8x512xi16>
    %1 = arith.extsi %0 : vector<8x512xi16> to vector<8x512xi32>
    %c0_1 = arith.constant 0 : index
    %c0_2 = arith.constant 0 : index
    %2 = vector.load %arg5[%c0_1, %c0_2] : memref<8x512xi32, #tpu.memory_space<vmem>>, vector<8x512xi32>
    tpu.vector_store %arg5[%c0_1, %c0_2], %1 {strides = array<i32>} : memref<8x512xi32, #tpu.memory_space<vmem>>, vector<8x512xi32>,
    %c0_3 = arith.constant 0 : index
    %3 = memref.load %arg3[%c0_3] : memref<1xf32, #tpu.memory_space<smem>>
    %4 = tpu.iota {dimensions = array<i32: 1>} : vector<1x32xi32>
    %c1_i32 = arith.constant 1 : i32
    %5 = vector.broadcast %c1_i32 : i32 to vector<1x32xi32>
    %6 = arith.cmpi eq, %4, %5 : vector<1x32xi32>
    %c0_4 = arith.constant 0 : index
    %c0_5 = arith.constant 0 : index
    %7 = vector.load %arg2[%c0_4, %c0_5] : memref<1x32xf32, #tpu.memory_space<vmem>>, vector<1x32xf32>
    %8 = vector.broadcast %3 : f32 to vector<1x32xf32>
    %9 = arith.addf %7, %8 : vector<1x32xf32>
    %cst = arith.constant 0.000000e+00 : f32
    %10 = vector.broadcast %cst : f32 to vector<1x32xf32>
    %11 = arith.select %6, %10, %9 : vector<1x32xi1>, vector<1x32xf32>
    %12 = tpu.iota {dimensions = array<i32: 0>} : vector<32x512xi32>
    %cst_6 = arith.constant 0.000000e+00 : f32
    %13 = vector.broadcast %cst_6 : f32 to vector<32x512xf32>
    %c0_i32 = arith.constant 0 : i32
    %14 = arith.index_cast %c0_i32 : i32 to index
    %c0_7 = arith.constant 0 : index
    %15 = vector.load %arg5[%14, %c0_7] : memref<8x512xi32, #tpu.memory_space<vmem>>, vector<1x512xi32>
    %16 = vector.broadcast %15 : vector<1x512xi32> to vector<32x512xi32>
    %17 = arith.cmpi eq, %16, %12 : vector<32x512xi32>
    %18 = arith.extui %17 : vector<32x512xi1> to vector<32x512xi32>
    %19 = arith.sitofp %18 : vector<32x512xi32> to vector<32x512xf32>
    %20 = arith.addf %13, %19 : vector<32x512xf32>
    %c1_i32_8 = arith.constant 1 : i32
    %21 = arith.index_cast %c1_i32_8 : i32 to index
    %c0_9 = arith.constant 0 : index
    %22 = vector.load %arg5[%21, %c0_9] : memref<8x512xi32, #tpu.memory_space<vmem>>, vector<1x512xi32>
    %23 = vector.broadcast %22 : vector<1x512xi32> to vector<32x512xi32>
    %24 = arith.cmpi eq, %23, %12 : vector<32x512xi32>
    %25 = arith.extui %24 : vector<32x512xi1> to vector<32x512xi32>
    %26 = arith.sitofp %25 : vector<32x512xi32> to vector<32x512xf32>
    %27 = arith.addf %20, %26 : vector<32x512xf32>
    %c2_i32 = arith.constant 2 : i32
    %28 = arith.index_cast %c2_i32 : i32 to index
    %c0_10 = arith.constant 0 : index
    %29 = vector.load %arg5[%28, %c0_10] : memref<8x512xi32, #tpu.memory_space<vmem>>, vector<1x512xi32>
    %30 = vector.broadcast %29 : vector<1x512xi32> to vector<32x512xi32>
    %31 = arith.cmpi eq, %30, %12 : vector<32x512xi32>
    %32 = arith.extui %31 : vector<32x512xi1> to vector<32x512xi32>
    %33 = arith.sitofp %32 : vector<32x512xi32> to vector<32x512xf32>
    %34 = arith.addf %27, %33 : vector<32x512xf32>
    %c3_i32 = arith.constant 3 : i32
    %35 = arith.index_cast %c3_i32 : i32 to index
    %c0_11 = arith.constant 0 : index
    %36 = vector.load %arg5[%35, %c0_11] : memref<8x512xi32, #tpu.memory_space<vmem>>, vector<1x512xi32>
    %37 = vector.broadcast %36 : vector<1x512xi32> to vector<32x512xi32>
    %38 = arith.cmpi eq, %37, %12 : vector<32x512xi32>
    %39 = arith.extui %38 : vector<32x512xi1> to vector<32x512xi32>
    %40 = arith.sitofp %39 : vector<32x512xi32> to vector<32x512xf32>
    %41 = arith.addf %34, %40 : vector<32x512xf32>
    %c4_i32 = arith.constant 4 : i32
    %42 = arith.index_cast %c4_i32 : i32 to index
    %c0_12 = arith.constant 0 : index
    %43 = vector.load %arg5[%42, %c0_12] : memref<8x512xi32, #tpu.memory_space<vmem>>, vector<1x512xi32>
    %44 = vector.broadcast %43 : vector<1x512xi32> to vector<32x512xi32>
    %45 = arith.cmpi eq, %44, %12 : vector<32x512xi32>
    %46 = arith.extui %45 : vector<32x512xi1> to vector<32x512xi32>
    %47 = arith.sitofp %46 : vector<32x512xi32> to vector<32x512xf32>
    %48 = arith.addf %41, %47 : vector<32x512xf32>
    %c5_i32 = arith.constant 5 : i32
    %49 = arith.index_cast %c5_i32 : i32 to index
    %c0_13 = arith.constant 0 : index
    %50 = vector.load %arg5[%49, %c0_13] : memref<8x512xi32, #tpu.memory_space<vmem>>, vector<1x512xi32>
    %51 = vector.broadcast %50 : vector<1x512xi32> to vector<32x512xi32>
    %52 = arith.cmpi eq, %51, %12 : vector<32x512xi32>
    %53 = arith.extui %52 : vector<32x512xi1> to vector<32x512xi32>
    %54 = arith.sitofp %53 : vector<32x512xi32> to vector<32x512xf32>
    %55 = arith.addf %48, %54 : vector<32x512xf32>
    %c6_i32 = arith.constant 6 : i32
    %56 = arith.index_cast %c6_i32 : i32 to index
    %c0_14 = arith.constant 0 : index
    %57 = vector.load %arg5[%56, %c0_14] : memref<8x512xi32, #tpu.memory_space<vmem>>, vector<1x512xi32>
    %58 = vector.broadcast %57 : vector<1x512xi32> to vector<32x512xi32>
    %59 = arith.cmpi eq, %58, %12 : vector<32x512xi32>
    %60 = arith.extui %59 : vector<32x512xi1> to vector<32x512xi32>
    %61 = arith.sitofp %60 : vector<32x512xi32> to vector<32x512xf32>
    %62 = arith.addf %55, %61 : vector<32x512xf32>
    %c7_i32 = arith.constant 7 : i32
    %63 = arith.index_cast %c7_i32 : i32 to index
    %c0_15 = arith.constant 0 : index
    %64 = vector.load %arg5[%63, %c0_15] : memref<8x512xi32, #tpu.memory_space<vmem>>, vector<1x512xi32>
    %65 = vector.broadcast %64 : vector<1x512xi32> to vector<32x512xi32>
    %66 = arith.cmpi eq, %65, %12 : vector<32x512xi32>
    %67 = arith.extui %66 : vector<32x512xi1> to vector<32x512xi32>
    %68 = arith.sitofp %67 : vector<32x512xi32> to vector<32x512xf32>
    %69 = arith.addf %62, %68 : vector<32x512xf32>
    %c8_i32 = arith.constant 8 : i32
    %cst_16 = arith.constant dense<0.000000e+00> : vector<1x512xf32>
    %70 = tpu.matmul %11, %69, %cst_16 {dimension_numbers = #tpu.dot_dimension_numbers<[1], [0], [0], [1], [0, 0, 1, 1], [], []>} : vector<1x32xf32>, vector<32x512xf32>, vector<1x512xf32> -> vector<1x512xf32>
    %71 = arith.negf %70 : vector<1x512xf32>
    %72 = math.exp %71 : vector<1x512xf32>
    %cst_17 = arith.constant 1.000000e+00 : f32
    %73 = vector.broadcast %cst_17 : f32 to vector<1x512xf32>
    %74 = arith.addf %73, %72 : vector<1x512xf32>
    %75 = arith.divf %73, %74 : vector<1x512xf32>
    %c0_18 = arith.constant 0 : index
    %c0_19 = arith.constant 0 : index
    %76 = vector.load %arg4[%c0_18, %c0_19] : memref<2x512xf32, #tpu.memory_space<vmem>>, vector<1x512xf32>
    tpu.vector_store %arg4[%c0_18, %c0_19], %75 {strides = array<i32>} : memref<2x512xf32, #tpu.memory_space<vmem>>, vector<1x512xf32>,
    %cst_20 = arith.constant 1.000000e+00 : f32
    %77 = vector.broadcast %cst_20 : f32 to vector<1x512xf32>
    %78 = arith.subf %77, %75 : vector<1x512xf32>
    %c1 = arith.constant 1 : index
    %c0_21 = arith.constant 0 : index
    %79 = vector.load %arg4[%c1, %c0_21] : memref<2x512xf32, #tpu.memory_space<vmem>>, vector<1x512xf32>
    tpu.vector_store %arg4[%c1, %c0_21], %78 {strides = array<i32>} : memref<2x512xf32, #tpu.memory_space<vmem>>, vector<1x512xf32>,
    return
  }
  func.func @transform_0(%arg0: i32) -> (i32, i32) {
    %c0_i32 = arith.constant 0 : i32
    %c0_i32_0 = arith.constant 0 : i32
    return %c0_i32, %arg0 : i32, i32
  }
  func.func @transform_1(%arg0: i32) -> (i32, i32) {
    %c0_i32 = arith.constant 0 : i32
    %c0_i32_0 = arith.constant 0 : i32
    %c0_i32_1 = arith.constant 0 : i32
    return %c0_i32, %c0_i32_0 : i32, i32
  }
  func.func @transform_2(%arg0: i32) -> i32 {
    %c0_i32 = arith.constant 0 : i32
    %c0_i32_0 = arith.constant 0 : i32
    return %c0_i32 : i32
  }
  func.func @transform_3(%arg0: i32) -> (i32, i32) {
    %c0_i32 = arith.constant 0 : i32
    %c0_i32_0 = arith.constant 0 : i32
    return %c0_i32, %arg0 : i32, i32
  }
}

</mosaic_0001>

<llo_original>
// kernel: tpu_custom_call.1
$region0: #{tpu_custom_call.1}
  #allocation0 [shape = 'u32[]', space=smem, size = 0x4, offset = 0x4, fixed_abs, tag = 'smem constant byte address 0x4 - core index']
  #allocation1 [shape = 'u32[72,128]{1,0:T(1,128)}', space=vmem, size = 0x9000, scoped, tag = 'internal scratch']
  #allocation2 [shape = 's32[8,512]{1,0:T(8,128)}', space=vmem, size = 0x4000, scoped, tag = 'scratch operand']
  #allocation3 [shape = 'f32[1]{0:T(128)S(6)}', space=smem, size = 0x200, scoped, tag = 'scoped memory for tpu_custom_call.1']
  %s0 = inlined_call_operand.hbm [shape: s16[8,512], index: 0, kind: input, shape index: {}]
  %s1 = inlined_call_operand.vmem [shape: f32[1,32], index: 1, kind: input, shape index: {}]
  %s2 = inlined_call_operand.<no memory space> [shape: f32[1], index: 2, kind: input, shape index: {}]
  %s3 = inlined_call_operand.hbm [shape: f32[2,512], index: 3, kind: output, shape index: {}]
  %s4 = sld [smem:[#allocation0]]
  $region26: #{tpu_custom_call.1} parent=0
    _
  %s6 = ssub.s32 1, %s4
  %s7 = scalar_select 0, %s6, %s4
  %8 = sst [smem:[#allocation3]] %s2
  $region1: #{tpu_custom_call.1} parent=0
    #allocation4 [shape = 'u8[8192]{0}', space=vmem, size = 0x2000, scoped, tag = 'input window, operand 0, single buffered']
    #allocation5 [shape = 's32[1]{0}', space=sflag, size = 0x4, scoped, tag = 'scoped memory for tpu_custom_call.1']
    #allocation6 [shape = 's32[1]{0}', space=sflag, size = 0x4, scoped, tag = 'scoped memory for tpu_custom_call.1']
    #allocation7 [shape = 'u8[4096]{0}', space=vmem, size = 0x1000, scoped, tag = 'output window, operand 0, single buffered']
    %9 = vsyncpa [#allocation5], 0
    %10 = vsyncpa [#allocation6], 0
    // Predicated region
    $region2: #{tpu_custom_call.1} parent=1 // pred_check
      _
    $region3: #{tpu_custom_call.1} parent=1 // pred_check_branch
      %12 = sbr.rel (0) target = $region5
    $region4: #{tpu_custom_call.1} parent=1 // pred_region
      %14 = vsyncadd [#allocation5], 0
      %s16 = sshll.u32 %s0, 4
      %s17 = int_to_ptr.hbm [resolvable:$true] %s16
      %s18 = sshll.u32 [#allocation4], 4
      %s19 = int_to_ptr.vmem [resolvable:$true] %s18
      %21 = dma.hbm_to_vmem [thread:$0]  %s17, 256, %s19, [#allocation5]
    $region5: #{tpu_custom_call.1} parent=1 // pred_fallthru
      _
    // Predicated region
    $region6: #{tpu_custom_call.1} parent=1 // pred_check
      _
    $region7: #{tpu_custom_call.1} parent=1 // pred_check_branch
      %23 = sbr.rel (0) target = $region9
    $region8: #{tpu_custom_call.1} parent=1 // pred_region
      _
    $region9: #{tpu_custom_call.1} parent=1 // pred_fallthru
      _
    // Predicated region
    $region10: #{tpu_custom_call.1} parent=1 // pred_check
      _
    $region11: #{tpu_custom_call.1} parent=1 // pred_check_branch
      %25 = sbr.rel (0) target = $region13
    $region12: #{tpu_custom_call.1} parent=1 // pred_region
      _
    $region13: #{tpu_custom_call.1} parent=1 // pred_fallthru
      _
    // Predicated region
    $region14: #{tpu_custom_call.1} parent=1 // pred_check
      _
    $region15: #{tpu_custom_call.1} parent=1 // pred_check_branch
      %27 = sbr.rel (0) target = $region17
    $region16: #{tpu_custom_call.1} parent=1 // pred_region
      %29 = dma.done [#allocation5], 256
    $region17: #{tpu_custom_call.1} parent=1 // pred_fallthru
      _
    %v30 = vld [vmem:[#allocation4] sm:$0xff]
    %v31 = vld [vmem:[#allocation4 + $0x8] sm:$0xff]
    %v32 = vunpack.c.l.b16 %v30
    %v33 = vunpack.c.h.b16 %v30
    %v34 = vunpack.c.l.b16 %v31
    %v35 = vunpack.c.h.b16 %v31
    %36 = vst [vmem:[#allocation2] sm:$0xff] %v32
    %37 = vst [vmem:[#allocation2 + $0x8] sm:$0xff] %v33
    %38 = vst [vmem:[#allocation2 + $0x10] sm:$0xff] %v34
    %39 = vst [vmem:[#allocation2 + $0x18] sm:$0xff] %v35
    %s40 = sld [smem:[#allocation3]]
    %v41 = vlaneseq
    %v42 = vand.u32 %v41, 127
    %vm43 = vcmp.eq.s32.totalorder %v42, 1
    %v44 = vld [vmem:[%s1] sm:$0x1]
    %v45 = vstv %s40
    %v46 = vadd.f32 %v44, %v45
    %v47 = vsel %vm43, 0.0, %v46
    %v48 = vlaneseq
    %v49 = vshrl.u32 %v48, 7
    %v50 = vadd.s32 %v49, 8
    %v51 = vadd.s32 %v49, 16
    %v52 = vadd.s32 %v49, 24
    %v53 = vld [vmem:[#allocation2] ss:$8 sm:$0xf]
    %v54 = vperm.slane %v53, 0
    %v55 = vperm.slane %v53, 1
    %v56 = vperm.slane %v53, 2
    %v57 = vperm.slane %v53, 3
    %vm58 = vcmp.eq.s32.totalorder %v54, %v49
    %vm59 = vcmp.eq.s32.totalorder %v55, %v49
    %vm60 = vcmp.eq.s32.totalorder %v56, %v49
    %vm61 = vcmp.eq.s32.totalorder %v57, %v49
    %vm62 = vcmp.eq.s32.totalorder %v54, %v50
    %vm63 = vcmp.eq.s32.totalorder %v55, %v50
    %vm64 = vcmp.eq.s32.totalorder %v56, %v50
    %vm65 = vcmp.eq.s32.totalorder %v57, %v50
    %vm66 = vcmp.eq.s32.totalorder %v54, %v51
    %vm67 = vcmp.eq.s32.totalorder %v55, %v51
    %vm68 = vcmp.eq.s32.totalorder %v56, %v51
    %vm69 = vcmp.eq.s32.totalorder %v57, %v51
    %vm70 = vcmp.eq.s32.totalorder %v54, %v52
    %vm71 = vcmp.eq.s32.totalorder %v55, %v52
    %vm72 = vcmp.eq.s32.totalorder %v56, %v52
    %vm73 = vcmp.eq.s32.totalorder %v57, %v52
    %v74 = vsel %vm58, 1, 0
    %v75 = vsel %vm59, 1, 0
    %v76 = vsel %vm60, 1, 0
    %v77 = vsel %vm61, 1, 0
    %v78 = vsel %vm62, 1, 0
    %v79 = vsel %vm63, 1, 0
    %v80 = vsel %vm64, 1, 0
    %v81 = vsel %vm65, 1, 0
    %v82 = vsel %vm66, 1, 0
    %v83 = vsel %vm67, 1, 0
    %v84 = vsel %vm68, 1, 0
    %v85 = vsel %vm69, 1, 0
    %v86 = vsel %vm70, 1, 0
    %v87 = vsel %vm71, 1, 0
    %v88 = vsel %vm72, 1, 0
    %v89 = vsel %vm73, 1, 0
    %v90 = vcvt.s32.f32 %v74
    %v91 = vcvt.s32.f32 %v75
    %v92 = vcvt.s32.f32 %v76
    %v93 = vcvt.s32.f32 %v77
    %v94 = vcvt.s32.f32 %v78
    %v95 = vcvt.s32.f32 %v79
    %v96 = vcvt.s32.f32 %v80
    %v97 = vcvt.s32.f32 %v81
    %v98 = vcvt.s32.f32 %v82
    %v99 = vcvt.s32.f32 %v83
    %v100 = vcvt.s32.f32 %v84
    %v101 = vcvt.s32.f32 %v85
    %v102 = vcvt.s32.f32 %v86
    %v103 = vcvt.s32.f32 %v87
    %v104 = vcvt.s32.f32 %v88
    %v105 = vcvt.s32.f32 %v89
    %v106 = vadd.f32 %v90, 0.0
    %v107 = vadd.f32 %v91, 0.0
    %v108 = vadd.f32 %v92, 0.0
    %v109 = vadd.f32 %v93, 0.0
    %v110 = vadd.f32 %v94, 0.0
    %v111 = vadd.f32 %v95, 0.0
    %v112 = vadd.f32 %v96, 0.0
    %v113 = vadd.f32 %v97, 0.0
    %v114 = vadd.f32 %v98, 0.0
    %v115 = vadd.f32 %v99, 0.0
    %v116 = vadd.f32 %v100, 0.0
    %v117 = vadd.f32 %v101, 0.0
    %v118 = vadd.f32 %v102, 0.0
    %v119 = vadd.f32 %v103, 0.0
    %v120 = vadd.f32 %v104, 0.0
    %v121 = vadd.f32 %v105, 0.0
    %s122 = scalar_lea.vmem [#allocation2], 1
    %v123 = vld [vmem:[%s122] ss:$8 sm:$0xf]
    %v124 = vperm.slane %v123, 0
    %v125 = vperm.slane %v123, 1
    %v126 = vperm.slane %v123, 2
    %v127 = vperm.slane %v123, 3
    %vm128 = vcmp.eq.s32.totalorder %v124, %v49
    %vm129 = vcmp.eq.s32.totalorder %v125, %v49
    %vm130 = vcmp.eq.s32.totalorder %v126, %v49
    %vm131 = vcmp.eq.s32.totalorder %v127, %v49
    %vm132 = vcmp.eq.s32.totalorder %v124, %v50
    %vm133 = vcmp.eq.s32.totalorder %v125, %v50
    %vm134 = vcmp.eq.s32.totalorder %v126, %v50
    %vm135 = vcmp.eq.s32.totalorder %v127, %v50
    %vm136 = vcmp.eq.s32.totalorder %v124, %v51
    %vm137 = vcmp.eq.s32.totalorder %v125, %v51
    %vm138 = vcmp.eq.s32.totalorder %v126, %v51
    %vm139 = vcmp.eq.s32.totalorder %v127, %v51
    %vm140 = vcmp.eq.s32.totalorder %v124, %v52
    %vm141 = vcmp.eq.s32.totalorder %v125, %v52
    %vm142 = vcmp.eq.s32.totalorder %v126, %v52
    %vm143 = vcmp.eq.s32.totalorder %v127, %v52
    %v144 = vsel %vm128, 1, 0
    %v145 = vsel %vm129, 1, 0
    %v146 = vsel %vm130, 1, 0
    %v147 = vsel %vm131, 1, 0
    %v148 = vsel %vm132, 1, 0
    %v149 = vsel %vm133, 1, 0
    %v150 = vsel %vm134, 1, 0
    %v151 = vsel %vm135, 1, 0
    %v152 = vsel %vm136, 1, 0
    %v153 = vsel %vm137, 1, 0
    %v154 = vsel %vm138, 1, 0
    %v155 = vsel %vm139, 1, 0
    %v156 = vsel %vm140, 1, 0
    %v157 = vsel %vm141, 1, 0
    %v158 = vsel %vm142, 1, 0
    %v159 = vsel %vm143, 1, 0
    %v160 = vcvt.s32.f32 %v144
    %v161 = vcvt.s32.f32 %v145
    %v162 = vcvt.s32.f32 %v146
    %v163 = vcvt.s32.f32 %v147
    %v164 = vcvt.s32.f32 %v148
    %v165 = vcvt.s32.f32 %v149
    %v166 = vcvt.s32.f32 %v150
    %v167 = vcvt.s32.f32 %v151
    %v168 = vcvt.s32.f32 %v152
    %v169 = vcvt.s32.f32 %v153
    %v170 = vcvt.s32.f32 %v154
    %v171 = vcvt.s32.f32 %v155
    %v172 = vcvt.s32.f32 %v156
    %v173 = vcvt.s32.f32 %v157
    %v174 = vcvt.s32.f32 %v158
    %v175 = vcvt.s32.f32 %v159
    %v176 = vadd.f32 %v106, %v160
    %v177 = vadd.f32 %v107, %v161
    %v178 = vadd.f32 %v108, %v162
    %v179 = vadd.f32 %v109, %v163
    %v180 = vadd.f32 %v110, %v164
    %v181 = vadd.f32 %v111, %v165
    %v182 = vadd.f32 %v112, %v166
    %v183 = vadd.f32 %v113, %v167
    %v184 = vadd.f32 %v114, %v168
    %v185 = vadd.f32 %v115, %v169
    %v186 = vadd.f32 %v116, %v170
    %v187 = vadd.f32 %v117, %v171
    %v188 = vadd.f32 %v118, %v172
    %v189 = vadd.f32 %v119, %v173
    %v190 = vadd.f32 %v120, %v174
    %v191 = vadd.f32 %v121, %v175
    %s192 = scalar_lea.vmem [#allocation2], 2
    %v193 = vld [vmem:[%s192] ss:$8 sm:$0xf]
    %v194 = vperm.slane %v193, 0
    %v195 = vperm.slane %v193, 1
    %v196 = vperm.slane %v193, 2
    %v197 = vperm.slane %v193, 3
    %vm198 = vcmp.eq.s32.totalorder %v194, %v49
    %vm199 = vcmp.eq.s32.totalorder %v195, %v49
    %vm200 = vcmp.eq.s32.totalorder %v196, %v49
    %vm201 = vcmp.eq.s32.totalorder %v197, %v49
    %vm202 = vcmp.eq.s32.totalorder %v194, %v50
    %vm203 = vcmp.eq.s32.totalorder %v195, %v50
    %vm204 = vcmp.eq.s32.totalorder %v196, %v50
    %vm205 = vcmp.eq.s32.totalorder %v197, %v50
    %vm206 = vcmp.eq.s32.totalorder %v194, %v51
    %vm207 = vcmp.eq.s32.totalorder %v195, %v51
    %vm208 = vcmp.eq.s32.totalorder %v196, %v51
    %vm209 = vcmp.eq.s32.totalorder %v197, %v51
    %vm210 = vcmp.eq.s32.totalorder %v194, %v52
    %vm211 = vcmp.eq.s32.totalorder %v195, %v52
    %vm212 = vcmp.eq.s32.totalorder %v196, %v52
    %vm213 = vcmp.eq.s32.totalorder %v197, %v52
    %v214 = vsel %vm198, 1, 0
    %v215 = vsel %vm199, 1, 0
    %v216 = vsel %vm200, 1, 0
    %v217 = vsel %vm201, 1, 0
    %v218 = vsel %vm202, 1, 0
    %v219 = vsel %vm203, 1, 0
    %v220 = vsel %vm204, 1, 0
    %v221 = vsel %vm205, 1, 0
    %v222 = vsel %vm206, 1, 0
    %v223 = vsel %vm207, 1, 0
    %v224 = vsel %vm208, 1, 0
    %v225 = vsel %vm209, 1, 0
    %v226 = vsel %vm210, 1, 0
    %v227 = vsel %vm211, 1, 0
    %v228 = vsel %vm212, 1, 0
    %v229 = vsel %vm213, 1, 0
    %v230 = vcvt.s32.f32 %v214
    %v231 = vcvt.s32.f32 %v215
    %v232 = vcvt.s32.f32 %v216
    %v233 = vcvt.s32.f32 %v217
    %v234 = vcvt.s32.f32 %v218
    %v235 = vcvt.s32.f32 %v219
    %v236 = vcvt.s32.f32 %v220
    %v237 = vcvt.s32.f32 %v221
    %v238 = vcvt.s32.f32 %v222
    %v239 = vcvt.s32.f32 %v223
    %v240 = vcvt.s32.f32 %v224
    %v241 = vcvt.s32.f32 %v225
    %v242 = vcvt.s32.f32 %v226
    %v243 = vcvt.s32.f32 %v227
    %v244 = vcvt.s32.f32 %v228
    %v245 = vcvt.s32.f32 %v229
    %v246 = vadd.f32 %v176, %v230
    %v247 = vadd.f32 %v177, %v231
    %v248 = vadd.f32 %v178, %v232
    %v249 = vadd.f32 %v179, %v233
    %v250 = vadd.f32 %v180, %v234
    %v251 = vadd.f32 %v181, %v235
    %v252 = vadd.f32 %v182, %v236
    %v253 = vadd.f32 %v183, %v237
    %v254 = vadd.f32 %v184, %v238
    %v255 = vadd.f32 %v185, %v239
    %v256 = vadd.f32 %v186, %v240
    %v257 = vadd.f32 %v187, %v241
    %v258 = vadd.f32 %v188, %v242
    %v259 = vadd.f32 %v189, %v243
    %v260 = vadd.f32 %v190, %v244
    %v261 = vadd.f32 %v191, %v245
    %s262 = scalar_lea.vmem [#allocation2], 3
    %v263 = vld [vmem:[%s262] ss:$8 sm:$0xf]
    %v264 = vperm.slane %v263, 0
    %v265 = vperm.slane %v263, 1
    %v266 = vperm.slane %v263, 2
    %v267 = vperm.slane %v263, 3
    %vm268 = vcmp.eq.s32.totalorder %v264, %v49
    %vm269 = vcmp.eq.s32.totalorder %v265, %v49
    %vm270 = vcmp.eq.s32.totalorder %v266, %v49
    %vm271 = vcmp.eq.s32.totalorder %v267, %v49
    %vm272 = vcmp.eq.s32.totalorder %v264, %v50
    %vm273 = vcmp.eq.s32.totalorder %v265, %v50
    %vm274 = vcmp.eq.s32.totalorder %v266, %v50
    %vm275 = vcmp.eq.s32.totalorder %v267, %v50
    %vm276 = vcmp.eq.s32.totalorder %v264, %v51
    %vm277 = vcmp.eq.s32.totalorder %v265, %v51
    %vm278 = vcmp.eq.s32.totalorder %v266, %v51
    %vm279 = vcmp.eq.s32.totalorder %v267, %v51
    %vm280 = vcmp.eq.s32.totalorder %v264, %v52
    %vm281 = vcmp.eq.s32.totalorder %v265, %v52
    %vm282 = vcmp.eq.s32.totalorder %v266, %v52
    %vm283 = vcmp.eq.s32.totalorder %v267, %v52
    %v284 = vsel %vm268, 1, 0
    %v285 = vsel %vm269, 1, 0
    %v286 = vsel %vm270, 1, 0
    %v287 = vsel %vm271, 1, 0
    %v288 = vsel %vm272, 1, 0
    %v289 = vsel %vm273, 1, 0
    %v290 = vsel %vm274, 1, 0
    %v291 = vsel %vm275, 1, 0
    %v292 = vsel %vm276, 1, 0
    %v293 = vsel %vm277, 1, 0
    %v294 = vsel %vm278, 1, 0
    %v295 = vsel %vm279, 1, 0
    %v296 = vsel %vm280, 1, 0
    %v297 = vsel %vm281, 1, 0
    %v298 = vsel %vm282, 1, 0
    %v299 = vsel %vm283, 1, 0
    %v300 = vcvt.s32.f32 %v284
    %v301 = vcvt.s32.f32 %v285
    %v302 = vcvt.s32.f32 %v286
    %v303 = vcvt.s32.f32 %v287
    %v304 = vcvt.s32.f32 %v288
    %v305 = vcvt.s32.f32 %v289
    %v306 = vcvt.s32.f32 %v290
    %v307 = vcvt.s32.f32 %v291
    %v308 = vcvt.s32.f32 %v292
    %v309 = vcvt.s32.f32 %v293
    %v310 = vcvt.s32.f32 %v294
    %v311 = vcvt.s32.f32 %v295
    %v312 = vcvt.s32.f32 %v296
    %v313 = vcvt.s32.f32 %v297
    %v314 = vcvt.s32.f32 %v298
    %v315 = vcvt.s32.f32 %v299
    %v316 = vadd.f32 %v246, %v300
    %v317 = vadd.f32 %v247, %v301
    %v318 = vadd.f32 %v248, %v302
    %v319 = vadd.f32 %v249, %v303
    %v320 = vadd.f32 %v250, %v304
    %v321 = vadd.f32 %v251, %v305
    %v322 = vadd.f32 %v252, %v306
    %v323 = vadd.f32 %v253, %v307
    %v324 = vadd.f32 %v254, %v308
    %v325 = vadd.f32 %v255, %v309
    %v326 = vadd.f32 %v256, %v310
    %v327 = vadd.f32 %v257, %v311
    %v328 = vadd.f32 %v258, %v312
    %v329 = vadd.f32 %v259, %v313
    %v330 = vadd.f32 %v260, %v314
    %v331 = vadd.f32 %v261, %v315
    %s332 = scalar_lea.vmem [#allocation2], 4
    %v333 = vld [vmem:[%s332] ss:$8 sm:$0xf]
    %v334 = vperm.slane %v333, 0
    %v335 = vperm.slane %v333, 1
    %v336 = vperm.slane %v333, 2
    %v337 = vperm.slane %v333, 3
    %vm338 = vcmp.eq.s32.totalorder %v334, %v49
    %vm339 = vcmp.eq.s32.totalorder %v335, %v49
    %vm340 = vcmp.eq.s32.totalorder %v336, %v49
    %vm341 = vcmp.eq.s32.totalorder %v337, %v49
    %vm342 = vcmp.eq.s32.totalorder %v334, %v50
    %vm343 = vcmp.eq.s32.totalorder %v335, %v50
    %vm344 = vcmp.eq.s32.totalorder %v336, %v50
    %vm345 = vcmp.eq.s32.totalorder %v337, %v50
    %vm346 = vcmp.eq.s32.totalorder %v334, %v51
    %vm347 = vcmp.eq.s32.totalorder %v335, %v51
    %vm348 = vcmp.eq.s32.totalorder %v336, %v51
    %vm349 = vcmp.eq.s32.totalorder %v337, %v51
    %vm350 = vcmp.eq.s32.totalorder %v334, %v52
    %vm351 = vcmp.eq.s32.totalorder %v335, %v52
    %vm352 = vcmp.eq.s32.totalorder %v336, %v52
    %vm353 = vcmp.eq.s32.totalorder %v337, %v52
    %v354 = vsel %vm338, 1, 0
    %v355 = vsel %vm339, 1, 0
    %v356 = vsel %vm340, 1, 0
    %v357 = vsel %vm341, 1, 0
    %v358 = vsel %vm342, 1, 0
    %v359 = vsel %vm343, 1, 0
    %v360 = vsel %vm344, 1, 0
    %v361 = vsel %vm345, 1, 0
    %v362 = vsel %vm346, 1, 0
    %v363 = vsel %vm347, 1, 0
    %v364 = vsel %vm348, 1, 0
    %v365 = vsel %vm349, 1, 0
    %v366 = vsel %vm350, 1, 0
    %v367 = vsel %vm351, 1, 0
    %v368 = vsel %vm352, 1, 0
    %v369 = vsel %vm353, 1, 0
    %v370 = vcvt.s32.f32 %v354
    %v371 = vcvt.s32.f32 %v355
    %v372 = vcvt.s32.f32 %v356
    %v373 = vcvt.s32.f32 %v357
    %v374 = vcvt.s32.f32 %v358
    %v375 = vcvt.s32.f32 %v359
    %v376 = vcvt.s32.f32 %v360
    %v377 = vcvt.s32.f32 %v361
    %v378 = vcvt.s32.f32 %v362
    %v379 = vcvt.s32.f32 %v363
    %v380 = vcvt.s32.f32 %v364
    %v381 = vcvt.s32.f32 %v365
    %v382 = vcvt.s32.f32 %v366
    %v383 = vcvt.s32.f32 %v367
    %v384 = vcvt.s32.f32 %v368
    %v385 = vcvt.s32.f32 %v369
    %v386 = vadd.f32 %v316, %v370
    %v387 = vadd.f32 %v317, %v371
    %v388 = vadd.f32 %v318, %v372
    %v389 = vadd.f32 %v319, %v373
    %v390 = vadd.f32 %v320, %v374
    %v391 = vadd.f32 %v321, %v375
    %v392 = vadd.f32 %v322, %v376
    %v393 = vadd.f32 %v323, %v377
    %v394 = vadd.f32 %v324, %v378
    %v395 = vadd.f32 %v325, %v379
    %v396 = vadd.f32 %v326, %v380
    %v397 = vadd.f32 %v327, %v381
    %v398 = vadd.f32 %v328, %v382
    %v399 = vadd.f32 %v329, %v383
    %v400 = vadd.f32 %v330, %v384
    %v401 = vadd.f32 %v331, %v385
    %s402 = scalar_lea.vmem [#allocation2], 5
    %v403 = vld [vmem:[%s402] ss:$8 sm:$0xf]
    %v404 = vperm.slane %v403, 0
    %v405 = vperm.slane %v403, 1
    %v406 = vperm.slane %v403, 2
    %v407 = vperm.slane %v403, 3
    %vm408 = vcmp.eq.s32.totalorder %v404, %v49
    %vm409 = vcmp.eq.s32.totalorder %v405, %v49
    %vm410 = vcmp.eq.s32.totalorder %v406, %v49
    %vm411 = vcmp.eq.s32.totalorder %v407, %v49
    %vm412 = vcmp.eq.s32.totalorder %v404, %v50
    %vm413 = vcmp.eq.s32.totalorder %v405, %v50
    %vm414 = vcmp.eq.s32.totalorder %v406, %v50
    %vm415 = vcmp.eq.s32.totalorder %v407, %v50
    %vm416 = vcmp.eq.s32.totalorder %v404, %v51
    %vm417 = vcmp.eq.s32.totalorder %v405, %v51
    %vm418 = vcmp.eq.s32.totalorder %v406, %v51
    %vm419 = vcmp.eq.s32.totalorder %v407, %v51
    %vm420 = vcmp.eq.s32.totalorder %v404, %v52
    %vm421 = vcmp.eq.s32.totalorder %v405, %v52
    %vm422 = vcmp.eq.s32.totalorder %v406, %v52
    %vm423 = vcmp.eq.s32.totalorder %v407, %v52
    %v424 = vsel %vm408, 1, 0
    %v425 = vsel %vm409, 1, 0
    %v426 = vsel %vm410, 1, 0
    %v427 = vsel %vm411, 1, 0
    %v428 = vsel %vm412, 1, 0
    %v429 = vsel %vm413, 1, 0
    %v430 = vsel %vm414, 1, 0
    %v431 = vsel %vm415, 1, 0
    %v432 = vsel %vm416, 1, 0
    %v433 = vsel %vm417, 1, 0
    %v434 = vsel %vm418, 1, 0
    %v435 = vsel %vm419, 1, 0
    %v436 = vsel %vm420, 1, 0
    %v437 = vsel %vm421, 1, 0
    %v438 = vsel %vm422, 1, 0
    %v439 = vsel %vm423, 1, 0
    %v440 = vcvt.s32.f32 %v424
    %v441 = vcvt.s32.f32 %v425
    %v442 = vcvt.s32.f32 %v426
    %v443 = vcvt.s32.f32 %v427
    %v444 = vcvt.s32.f32 %v428
    %v445 = vcvt.s32.f32 %v429
    %v446 = vcvt.s32.f32 %v430
    %v447 = vcvt.s32.f32 %v431
    %v448 = vcvt.s32.f32 %v432
    %v449 = vcvt.s32.f32 %v433
    %v450 = vcvt.s32.f32 %v434
    %v451 = vcvt.s32.f32 %v435
    %v452 = vcvt.s32.f32 %v436
    %v453 = vcvt.s32.f32 %v437
    %v454 = vcvt.s32.f32 %v438
    %v455 = vcvt.s32.f32 %v439
    %v456 = vadd.f32 %v386, %v440
    %v457 = vadd.f32 %v387, %v441
    %v458 = vadd.f32 %v388, %v442
    %v459 = vadd.f32 %v389, %v443
    %v460 = vadd.f32 %v390, %v444
    %v461 = vadd.f32 %v391, %v445
    %v462 = vadd.f32 %v392, %v446
    %v463 = vadd.f32 %v393, %v447
    %v464 = vadd.f32 %v394, %v448
    %v465 = vadd.f32 %v395, %v449
    %v466 = vadd.f32 %v396, %v450
    %v467 = vadd.f32 %v397, %v451
    %v468 = vadd.f32 %v398, %v452
    %v469 = vadd.f32 %v399, %v453
    %v470 = vadd.f32 %v400, %v454
    %v471 = vadd.f32 %v401, %v455
    %s472 = scalar_lea.vmem [#allocation2], 6
    %v473 = vld [vmem:[%s472] ss:$8 sm:$0xf]
    %v474 = vperm.slane %v473, 0
    %v475 = vperm.slane %v473, 1
    %v476 = vperm.slane %v473, 2
    %v477 = vperm.slane %v473, 3
    %vm478 = vcmp.eq.s32.totalorder %v474, %v49
    %vm479 = vcmp.eq.s32.totalorder %v475, %v49
    %vm480 = vcmp.eq.s32.totalorder %v476, %v49
    %vm481 = vcmp.eq.s32.totalorder %v477, %v49
    %vm482 = vcmp.eq.s32.totalorder %v474, %v50
    %vm483 = vcmp.eq.s32.totalorder %v475, %v50
    %vm484 = vcmp.eq.s32.totalorder %v476, %v50
    %vm485 = vcmp.eq.s32.totalorder %v477, %v50
    %vm486 = vcmp.eq.s32.totalorder %v474, %v51
    %vm487 = vcmp.eq.s32.totalorder %v475, %v51
    %vm488 = vcmp.eq.s32.totalorder %v476, %v51
    %vm489 = vcmp.eq.s32.totalorder %v477, %v51
    %vm490 = vcmp.eq.s32.totalorder %v474, %v52
    %vm491 = vcmp.eq.s32.totalorder %v475, %v52
    %vm492 = vcmp.eq.s32.totalorder %v476, %v52
    %vm493 = vcmp.eq.s32.totalorder %v477, %v52
    %v494 = vsel %vm478, 1, 0
    %v495 = vsel %vm479, 1, 0
    %v496 = vsel %vm480, 1, 0
    %v497 = vsel %vm481, 1, 0
    %v498 = vsel %vm482, 1, 0
    %v499 = vsel %vm483, 1, 0
    %v500 = vsel %vm484, 1, 0
    %v501 = vsel %vm485, 1, 0
    %v502 = vsel %vm486, 1, 0
    %v503 = vsel %vm487, 1, 0
    %v504 = vsel %vm488, 1, 0
    %v505 = vsel %vm489, 1, 0
    %v506 = vsel %vm490, 1, 0
    %v507 = vsel %vm491, 1, 0
    %v508 = vsel %vm492, 1, 0
    %v509 = vsel %vm493, 1, 0
    %v510 = vcvt.s32.f32 %v494
    %v511 = vcvt.s32.f32 %v495
    %v512 = vcvt.s32.f32 %v496
    %v513 = vcvt.s32.f32 %v497
    %v514 = vcvt.s32.f32 %v498
    %v515 = vcvt.s32.f32 %v499
    %v516 = vcvt.s32.f32 %v500
    %v517 = vcvt.s32.f32 %v501
    %v518 = vcvt.s32.f32 %v502
    %v519 = vcvt.s32.f32 %v503
    %v520 = vcvt.s32.f32 %v504
    %v521 = vcvt.s32.f32 %v505
    %v522 = vcvt.s32.f32 %v506
    %v523 = vcvt.s32.f32 %v507
    %v524 = vcvt.s32.f32 %v508
    %v525 = vcvt.s32.f32 %v509
    %v526 = vadd.f32 %v456, %v510
    %v527 = vadd.f32 %v457, %v511
    %v528 = vadd.f32 %v458, %v512
    %v529 = vadd.f32 %v459, %v513
    %v530 = vadd.f32 %v460, %v514
    %v531 = vadd.f32 %v461, %v515
    %v532 = vadd.f32 %v462, %v516
    %v533 = vadd.f32 %v463, %v517
    %v534 = vadd.f32 %v464, %v518
    %v535 = vadd.f32 %v465, %v519
    %v536 = vadd.f32 %v466, %v520
    %v537 = vadd.f32 %v467, %v521
    %v538 = vadd.f32 %v468, %v522
    %v539 = vadd.f32 %v469, %v523
    %v540 = vadd.f32 %v470, %v524
    %v541 = vadd.f32 %v471, %v525
    %s542 = scalar_lea.vmem [#allocation2], 7
    %v543 = vld [vmem:[%s542] ss:$8 sm:$0xf]
    %v544 = vperm.slane %v543, 0
    %v545 = vperm.slane %v543, 1
    %v546 = vperm.slane %v543, 2
    %v547 = vperm.slane %v543, 3
    %vm548 = vcmp.eq.s32.totalorder %v544, %v49
    %vm549 = vcmp.eq.s32.totalorder %v545, %v49
    %vm550 = vcmp.eq.s32.totalorder %v546, %v49
    %vm551 = vcmp.eq.s32.totalorder %v547, %v49
    %vm552 = vcmp.eq.s32.totalorder %v544, %v50
    %vm553 = vcmp.eq.s32.totalorder %v545, %v50
    %vm554 = vcmp.eq.s32.totalorder %v546, %v50
    %vm555 = vcmp.eq.s32.totalorder %v547, %v50
    %vm556 = vcmp.eq.s32.totalorder %v544, %v51
    %vm557 = vcmp.eq.s32.totalorder %v545, %v51
    %vm558 = vcmp.eq.s32.totalorder %v546, %v51
    %vm559 = vcmp.eq.s32.totalorder %v547, %v51
    %vm560 = vcmp.eq.s32.totalorder %v544, %v52
    %vm561 = vcmp.eq.s32.totalorder %v545, %v52
    %vm562 = vcmp.eq.s32.totalorder %v546, %v52
    %vm563 = vcmp.eq.s32.totalorder %v547, %v52
    %v564 = vsel %vm548, 1, 0
    %v565 = vsel %vm549, 1, 0
    %v566 = vsel %vm550, 1, 0
    %v567 = vsel %vm551, 1, 0
    %v568 = vsel %vm552, 1, 0
    %v569 = vsel %vm553, 1, 0
    %v570 = vsel %vm554, 1, 0
    %v571 = vsel %vm555, 1, 0
    %v572 = vsel %vm556, 1, 0
    %v573 = vsel %vm557, 1, 0
    %v574 = vsel %vm558, 1, 0
    %v575 = vsel %vm559, 1, 0
    %v576 = vsel %vm560, 1, 0
    %v577 = vsel %vm561, 1, 0
    %v578 = vsel %vm562, 1, 0
    %v579 = vsel %vm563, 1, 0
    %v580 = vcvt.s32.f32 %v564
    %v581 = vcvt.s32.f32 %v565
    %v582 = vcvt.s32.f32 %v566
    %v583 = vcvt.s32.f32 %v567
    %v584 = vcvt.s32.f32 %v568
    %v585 = vcvt.s32.f32 %v569
    %v586 = vcvt.s32.f32 %v570
    %v587 = vcvt.s32.f32 %v571
    %v588 = vcvt.s32.f32 %v572
    %v589 = vcvt.s32.f32 %v573
    %v590 = vcvt.s32.f32 %v574
    %v591 = vcvt.s32.f32 %v575
    %v592 = vcvt.s32.f32 %v576
    %v593 = vcvt.s32.f32 %v577
    %v594 = vcvt.s32.f32 %v578
    %v595 = vcvt.s32.f32 %v579
    %v596 = vadd.f32 %v526, %v580
    %v597 = vadd.f32 %v527, %v581
    %v598 = vadd.f32 %v528, %v582
    %v599 = vadd.f32 %v529, %v583
    %v600 = vadd.f32 %v530, %v584
    %v601 = vadd.f32 %v531, %v585
    %v602 = vadd.f32 %v532, %v586
    %v603 = vadd.f32 %v533, %v587
    %v604 = vadd.f32 %v534, %v588
    %v605 = vadd.f32 %v535, %v589
    %v606 = vadd.f32 %v536, %v590
    %v607 = vadd.f32 %v537, %v591
    %v608 = vadd.f32 %v538, %v592
    %v609 = vadd.f32 %v539, %v593
    %v610 = vadd.f32 %v540, %v594
    %v611 = vadd.f32 %v541, %v595
    %vm612 = vcmask 261120
    %v614 = vsel %vm612, %v47, 0
    %616 = vmatpush.msra.mxu0 0.0
    %617 = vmatpush.msra.mxu0 0.0
    %618 = vmatpush.msra.mxu0 0.0
    %619 = vmatpush.msra.mxu0 0.0
    %620 = vmatpush.msra.mxu0 0.0
    %621 = vmatpush.msra.mxu0 0.0
    %622 = vmatpush.msra.mxu0 0.0
    %623 = vmatpush.msra.mxu0 0.0
    %624 = vmatpush.msra.mxu0 0.0
    %625 = vmatpush.msra.mxu0 0.0
    %626 = vmatpush.msra.mxu0 0.0
    %627 = vmatpush.msra.mxu0 0.0
    %628 = vmatpush.msra.mxu0 %v608
    %629 = vmatpush.msra.mxu0 %v604
    %630 = vmatpush.msra.mxu0 %v600
    %631 = vmatpush.msra.mxu0 %v596
    %632 = vmatmul.f32.gmra.mxu0 %v614
    %v633 = vpop.f32.mrf.mxu0
    %v634 = vadd.f32 0.0, %v633
    %635 = vdwg.mxu0
    %636 = vmatpush.msra.mxu0 0.0
    %637 = vmatpush.msra.mxu0 0.0
    %638 = vmatpush.msra.mxu0 0.0
    %639 = vmatpush.msra.mxu0 0.0
    %640 = vmatpush.msra.mxu0 0.0
    %641 = vmatpush.msra.mxu0 0.0
    %642 = vmatpush.msra.mxu0 0.0
    %643 = vmatpush.msra.mxu0 0.0
    %644 = vmatpush.msra.mxu0 0.0
    %645 = vmatpush.msra.mxu0 0.0
    %646 = vmatpush.msra.mxu0 0.0
    %647 = vmatpush.msra.mxu0 0.0
    %648 = vmatpush.msra.mxu0 %v609
    %649 = vmatpush.msra.mxu0 %v605
    %650 = vmatpush.msra.mxu0 %v601
    %651 = vmatpush.msra.mxu0 %v597
    %652 = vmatmul.f32.gmra.mxu0 %v614
    %v653 = vpop.f32.mrf.mxu0
    %v654 = vadd.f32 0.0, %v653
    %655 = vdwg.mxu0
    %656 = vmatpush.msra.mxu0 0.0
    %657 = vmatpush.msra.mxu0 0.0
    %658 = vmatpush.msra.mxu0 0.0
    %659 = vmatpush.msra.mxu0 0.0
    %660 = vmatpush.msra.mxu0 0.0
    %661 = vmatpush.msra.mxu0 0.0
    %662 = vmatpush.msra.mxu0 0.0
    %663 = vmatpush.msra.mxu0 0.0
    %664 = vmatpush.msra.mxu0 0.0
    %665 = vmatpush.msra.mxu0 0.0
    %666 = vmatpush.msra.mxu0 0.0
    %667 = vmatpush.msra.mxu0 0.0
    %668 = vmatpush.msra.mxu0 %v610
    %669 = vmatpush.msra.mxu0 %v606
    %670 = vmatpush.msra.mxu0 %v602
    %671 = vmatpush.msra.mxu0 %v598
    %672 = vmatmul.f32.gmra.mxu0 %v614
    %v673 = vpop.f32.mrf.mxu0
    %v674 = vadd.f32 0.0, %v673
    %675 = vdwg.mxu0
    %676 = vmatpush.msra.mxu0 0.0
    %677 = vmatpush.msra.mxu0 0.0
    %678 = vmatpush.msra.mxu0 0.0
    %679 = vmatpush.msra.mxu0 0.0
    %680 = vmatpush.msra.mxu0 0.0
    %681 = vmatpush.msra.mxu0 0.0
    %682 = vmatpush.msra.mxu0 0.0
    %683 = vmatpush.msra.mxu0 0.0
    %684 = vmatpush.msra.mxu0 0.0
    %685 = vmatpush.msra.mxu0 0.0
    %686 = vmatpush.msra.mxu0 0.0
    %687 = vmatpush.msra.mxu0 0.0
    %688 = vmatpush.msra.mxu0 %v611
    %689 = vmatpush.msra.mxu0 %v607
    %690 = vmatpush.msra.mxu0 %v603
    %691 = vmatpush.msra.mxu0 %v599
    %692 = vmatmul.f32.gmra.mxu0 %v614
    %v693 = vpop.f32.mrf.mxu0
    %v694 = vadd.f32 0.0, %v693
    %695 = vdwg.mxu0
    %v696 = vxor.u32 %v634, 2147483648
    %v697 = vxor.u32 %v654, 2147483648
    %v698 = vxor.u32 %v674, 2147483648
    %v699 = vxor.u32 %v694, 2147483648
    %v700 = vmul.f32 %v696, 1.442695
    %v701 = vpow.pop %v700
    %v702 = vmul.f32 %v697, 1.442695
    %v703 = vpow.pop %v702
    %v704 = vmul.f32 %v698, 1.442695
    %v705 = vpow.pop %v704
    %v706 = vmul.f32 %v699, 1.442695
    %v707 = vpow.pop %v706
    %v708 = vadd.f32 %v701, 1.0
    %v709 = vadd.f32 %v703, 1.0
    %v710 = vadd.f32 %v705, 1.0
    %v711 = vadd.f32 %v707, 1.0
    %v712 = vrcp.pop %v708
    %v713 = vmul.f32 %v708, %v712
    %v714 = vsub.f32 1.0, %v713
    %v715 = vmul.f32 %v712, %v714
    %v716 = vadd.f32 %v712, %v715
    %vm717 = vweird.f32 %v708
    %vm718 = vweird.f32 %v712
    %vm719 = vmor %vm717, %vm718
    %v720 = vsel %vm719, %v712, %v716
    %v721 = vand.u32 2147483647, %v708
    %vm722 = vcmp.eq.f32.partialorder %v721, 8.507059e+37
    %v723 = vand.u32 %v708, 2147483648
    %v724 = vor.u32 1.1754944e-38, %v723
    %v725 = vsel %vm722, %v724, %v720
    %v726 = vmul.f32 1.0, %v725
    %v727 = vrcp.pop %v709
    %v728 = vmul.f32 %v709, %v727
    %v729 = vsub.f32 1.0, %v728
    %v730 = vmul.f32 %v727, %v729
    %v731 = vadd.f32 %v727, %v730
    %vm732 = vweird.f32 %v709
    %vm733 = vweird.f32 %v727
    %vm734 = vmor %vm732, %vm733
    %v735 = vsel %vm734, %v727, %v731
    %v736 = vand.u32 2147483647, %v709
    %vm737 = vcmp.eq.f32.partialorder %v736, 8.507059e+37
    %v738 = vand.u32 %v709, 2147483648
    %v739 = vor.u32 1.1754944e-38, %v738
    %v740 = vsel %vm737, %v739, %v735
    %v741 = vmul.f32 1.0, %v740
    %v742 = vrcp.pop %v710
    %v743 = vmul.f32 %v710, %v742
    %v744 = vsub.f32 1.0, %v743
    %v745 = vmul.f32 %v742, %v744
    %v746 = vadd.f32 %v742, %v745
    %vm747 = vweird.f32 %v710
    %vm748 = vweird.f32 %v742
    %vm749 = vmor %vm747, %vm748
    %v750 = vsel %vm749, %v742, %v746
    %v751 = vand.u32 2147483647, %v710
    %vm752 = vcmp.eq.f32.partialorder %v751, 8.507059e+37
    %v753 = vand.u32 %v710, 2147483648
    %v754 = vor.u32 1.1754944e-38, %v753
    %v755 = vsel %vm752, %v754, %v750
    %v756 = vmul.f32 1.0, %v755
    %v757 = vrcp.pop %v711
    %v758 = vmul.f32 %v711, %v757
    %v759 = vsub.f32 1.0, %v758
    %v760 = vmul.f32 %v757, %v759
    %v761 = vadd.f32 %v757, %v760
    %vm762 = vweird.f32 %v711
    %vm763 = vweird.f32 %v757
    %vm764 = vmor %vm762, %vm763
    %v765 = vsel %vm764, %v757, %v761
    %v766 = vand.u32 2147483647, %v711
    %vm767 = vcmp.eq.f32.partialorder %v766, 8.507059e+37
    %v768 = vand.u32 %v711, 2147483648
    %v769 = vor.u32 1.1754944e-38, %v768
    %v770 = vsel %vm767, %v769, %v765
    %v771 = vmul.f32 1.0, %v770
    %v776 = vrot.slane %v741, 7
    %v777 = vrot.slane %v756, 6
    %v778 = vrot.slane %v771, 5
    %vm779 = vcmask 1040384
    %v780 = vsel %vm779, %v726, %v776
    %vm781 = vcmask 1042434
    %v782 = vsel %vm781, %v777, %v778
    %vm783 = vcmask 1041408
    %v784 = vsel %vm783, %v780, %v782
    %v786 = vlaneseq
    %vm787 = vcmp.ge.s32.totalorder %v786, 0
    %vm788 = vcmp.lt.s32.totalorder %v786, 512
    %vm789 = vmand %vm787, %vm788
    %790 = vst.msk [vmem:[#allocation7] ss:$2 sm:$0xf] %vm789, %v784
    %v791 = vsub.f32 1.0, %v726
    %v792 = vsub.f32 1.0, %v741
    %v793 = vsub.f32 1.0, %v756
    %v794 = vsub.f32 1.0, %v771
    %v799 = vrot.slane %v792, 7
    %v800 = vrot.slane %v793, 6
    %v801 = vrot.slane %v794, 5
    %v802 = vsel %vm779, %v791, %v799
    %v803 = vsel %vm781, %v800, %v801
    %v804 = vsel %vm783, %v802, %v803
    %s806 = scalar_lea.vmem [#allocation7], 1
    %807 = vst.msk [vmem:[%s806] ss:$2 sm:$0xf] %vm789, %v804
    // Predicated region
    $region18: #{tpu_custom_call.1} parent=1 // pred_check
      _
    $region19: #{tpu_custom_call.1} parent=1 // pred_check_branch
      %809 = sbr.rel (0) target = $region21
    $region20: #{tpu_custom_call.1} parent=1 // pred_region
      %811 = vsyncadd [#allocation6], 0
      %s813 = sshll.u32 [#allocation7], 4
      %s814 = int_to_ptr.vmem [resolvable:$true] %s813
      %s815 = sshll.u32 %s3, 4
      %s816 = int_to_ptr.hbm [resolvable:$true] %s815
      %818 = dma.vmem_to_hbm [thread:$0]  %s814, 128, %s816, [#allocation6]
    $region21: #{tpu_custom_call.1} parent=1 // pred_fallthru
      _
    // Predicated region
    $region22: #{tpu_custom_call.1} parent=1 // pred_check
      _
    $region23: #{tpu_custom_call.1} parent=1 // pred_check_branch
      %820 = sbr.rel (0) target = $region25
    $region24: #{tpu_custom_call.1} parent=1 // pred_region
      %822 = dma.done [#allocation6], 128
    $region25: #{tpu_custom_call.1} parent=1 // pred_fallthru
      _
    %823 = vsyncpa [#allocation5], 1
    %824 = vsyncpa [#allocation6], 1

</llo_original>
